<compile_context>
chip_gen: v7x
topology: tpu7x:2x2x1
jax: 0.10.0
libtpu: 0.0.40
codegen_flags: <defaults>
</compile_context>

<pallas_src>
import jax
import jax.numpy as jnp
from jax.experimental import pallas as pl
from jax.experimental.pallas import tpu as pltpu

LANE = 128


def _round_up(x, m):
    return ((x + m - 1) // m) * m


def radar_ann_kernel(x_ref, w1_ref, b1_ref, w2_ref, b2_ref, o_ref):
    # Cast x to the weight dtype (bf16) in-kernel at the MXU boundary; no
    # separate XLA astype pass over x in HBM.
    x = x_ref[...].astype(w1_ref.dtype)
    # Hidden layer: f32 accumulation on the MXU, f32 bias add + ReLU on VPU.
    h = jnp.dot(x, w1_ref[...], preferred_element_type=jnp.float32)
    h = jnp.maximum(h + b1_ref[...], 0.0)
    # Output layer: bf16 operands at the precision boundary, f32 accumulation.
    out = jnp.dot(h.astype(w2_ref.dtype), w2_ref[...],
                  preferred_element_type=jnp.float32)
    # Unpadded store: o_ref last dim == num_classes (full array dim). Masked
    # vst is fine — this kernel is HBM-bound, and the narrow store cuts output
    # writeback 16x vs a 128-lane-padded f32 store.
    o_ref[...] = (out + b2_ref[...]).astype(o_ref.dtype)


def radar_ann_forward(x, w1, b1, w2, b2, *, tile_b=None):
    """Fused fc1 -> ReLU -> fc2.
    x:(B,in) f32, w1:(in,hid), b1:(1,hid), w2:(hid,classes), b2:(1,classes).
    Returns (B, classes) float32. `hid` may be the padded hidden dim from
    prepare_params (padded units are exact zeros, semantics unchanged)."""
    B, input_size = x.shape
    hidden = w1.shape[1]
    num_classes = w2.shape[1]
    assert b1.shape == (1, hidden)
    assert w2.shape[0] == hidden
    assert b2.shape == (1, num_classes)

    if tile_b is None:
        # >=4 grid steps when B allows (megacore sharding on v7x), big tiles to
        # amortize per-step overhead, 128-row alignment, 4096-row cap keeps
        # double-buffered tiles well under v5e's 16 MiB default scoped VMEM.
        tile_b = max(LANE, min(4096, _round_up(pl.cdiv(B, 4), LANE)))

    grid = (pl.cdiv(B, tile_b),)  # ragged last block handled by Pallas

    flops = 2 * B * (input_size * hidden + hidden * num_classes)
    bytes_accessed = (
        x.size * x.dtype.itemsize
        + w1.size * w1.dtype.itemsize + b1.size * b1.dtype.itemsize
        + w2.size * w2.dtype.itemsize + b2.size * b2.dtype.itemsize
        + B * num_classes * 4
    )

    return pl.pallas_call(
        radar_ann_kernel,
        out_shape=jax.ShapeDtypeStruct((B, num_classes), jnp.float32),
        grid=grid,
        in_specs=[
            # Only the x tile advances with the grid index.
            pl.BlockSpec((tile_b, input_size), lambda i: (i, 0)),
            # Weights / biases stay resident in VMEM (block (0, 0) every step).
            pl.BlockSpec((input_size, hidden), lambda i: (0, 0)),
            pl.BlockSpec((1, hidden), lambda i: (0, 0)),
            pl.BlockSpec((hidden, num_classes), lambda i: (0, 0)),
            pl.BlockSpec((1, num_classes), lambda i: (0, 0)),
        ],
        out_specs=pl.BlockSpec((tile_b, num_classes), lambda i: (i, 0)),
        compiler_params=pltpu.CompilerParams(
            dimension_semantics=("parallel",),  # both TCs on v7x
        ),
        cost_estimate=pl.CostEstimate(
            flops=flops, transcendentals=0, bytes_accessed=bytes_accessed),
    )(x, w1, b1, w2, b2)


def init_params(key, input_size, hidden_size, num_classes,
                weight_dtype=jnp.bfloat16, bias_dtype=jnp.float32):
    """Mirror nn.Linear's U(-1/sqrt(fan_in), 1/sqrt(fan_in)) init.
    Weights stored as (in, out) so the kernel computes x @ W (== torch x @ W.T).
    Weights in bf16 (MXU-native), biases in f32 (f32 elementwise path)."""
    k1, k2, k3, k4 = jax.random.split(key, 4)
    bound1 = 1.0 / jnp.sqrt(input_size)
    bound2 = 1.0 / jnp.sqrt(hidden_size)
    w1 = jax.random.uniform(k1, (input_size, hidden_size), jnp.float32,
                            -bound1, bound1).astype(weight_dtype)
    b1 = jax.random.uniform(k2, (1, hidden_size), bias_dtype, -bound1, bound1)
    w2 = jax.random.uniform(k3, (hidden_size, num_classes), jnp.float32,
                            -bound2, bound2).astype(weight_dtype)
    b2 = jax.random.uniform(k4, (1, num_classes), bias_dtype, -bound2, bound2)
    return w1, b1, w2, b2


def prepare_params(w1, b1, w2, b2):
    """One-time prep (hoisted out of the forward pass): zero-pad the hidden
    dim to a multiple of 128 lanes so the in-kernel h tile / bias-add / ReLU
    are lane-dense and fc2's contraction dim fills the MXU. Padded hidden
    units are exactly zero after ReLU, so semantics are unchanged."""
    hidden = w1.shape[1]
    hpad = _round_up(hidden, LANE)
    if hpad != hidden:
        w1 = jnp.pad(w1, ((0, 0), (0, hpad - hidden)))
        b1 = jnp.pad(b1, ((0, 0), (0, hpad - hidden)))
        w2 = jnp.pad(w2, ((0, hpad - hidden), (0, 0)))
    return w1, b1, w2, b2


def ref_forward(x, w1, b1, w2, b2):
    """Plain-JAX reference of the same math/precision path (bf16 matmul
    operands, f32 accumulation, f32 bias/ReLU), using UNPADDED params."""
    xf = x.astype(w1.dtype).astype(jnp.float32)
    w1f = w1.astype(jnp.float32)
    w2f = w2.astype(jnp.float32)
    h = jnp.maximum(jnp.dot(xf, w1f) + b1, 0.0)
    hf = h.astype(w2.dtype).astype(jnp.float32)
    return jnp.dot(hf, w2f) + b2


if __name__ == "__main__":
    input_size, hidden_size, num_classes = 64, 32, 8
    batch = 8

    key = jax.random.PRNGKey(0)
    kx, kp = jax.random.split(key)
    x = jax.random.normal(kx, (batch, input_size), jnp.float32)
    w1, b1, w2, b2 = init_params(kp, input_size, hidden_size, num_classes)
    pw1, pb1, pw2, pb2 = prepare_params(w1, b1, w2, b2)

    # Small-batch check (single grid step, partial batch block).
    out = jax.block_until_ready(radar_ann_forward(x, pw1, pb1, pw2, pb2))
    ref = ref_forward(x, w1, b1, w2, b2)
    assert out.shape == (batch, num_classes)
    assert jnp.allclose(out, ref, atol=1e-3, rtol=1e-3)

    # Multi-tile / ragged-grid check: B=300 with tile_b=128 -> 3 grid steps,
    # last block partial (only valid rows are written back).
    x_big = jax.random.normal(jax.random.PRNGKey(1), (300, input_size),
                              jnp.float32)
    out_big = jax.block_until_ready(
        radar_ann_forward(x_big, pw1, pb1, pw2, pb2, tile_b=128))
    ref_big = ref_forward(x_big, w1, b1, w2, b2)
    assert out_big.shape == (300, num_classes)
    assert jnp.allclose(out_big, ref_big, atol=1e-3, rtol=1e-3)

    print("KERNEL_OK")
</pallas_src>

<mosaic_0001>
module attributes {stable_mosaic.version = 11 : i64} {
  func.func @radar_ann_kernel(%arg0: i32, %arg1: memref<128x64xf32, #tpu.memory_space<vmem>>, %arg2: memref<64x128xbf16, #tpu.memory_space<vmem>>, %arg3: memref<1x128xf32, #tpu.memory_space<vmem>>, %arg4: memref<128x8xbf16, #tpu.memory_space<vmem>>, %arg5: memref<1x8xf32, #tpu.memory_space<vmem>>, %arg6: memref<128x8xf32, #tpu.memory_space<vmem>>) attributes {dimension_semantics = [#tpu.dimension_semantics<parallel>], iteration_bounds = array<i64: 1>, scalar_prefetch = 0 : i64, scratch_operands = 0 : i64, tpu.core_type = #tpu.core_type<tc>, window_params = [{transform_indices = @transform_0, window_bounds = array<i64: 128, 64>}, {pipeline_mode = #tpu.pipeline_mode<synchronous>, transform_indices = @transform_1, window_bounds = array<i64: 64, 128>}, {pipeline_mode = #tpu.pipeline_mode<synchronous>, transform_indices = @transform_2, window_bounds = array<i64: 1, 128>}, {pipeline_mode = #tpu.pipeline_mode<synchronous>, transform_indices = @transform_3, window_bounds = array<i64: 128, 8>}, {pipeline_mode = #tpu.pipeline_mode<synchronous>, transform_indices = @transform_4, window_bounds = array<i64: 1, 8>}, {transform_indices = @transform_5, window_bounds = array<i64: 128, 8>}]} {
    %c0 = arith.constant 0 : index
    %c0_0 = arith.constant 0 : index
    %0 = vector.load %arg1[%c0, %c0_0] : memref<128x64xf32, #tpu.memory_space<vmem>>, vector<128x64xf32>
    %1 = arith.truncf %0 : vector<128x64xf32> to vector<128x64xbf16>
    %c0_1 = arith.constant 0 : index
    %c0_2 = arith.constant 0 : index
    %2 = vector.load %arg2[%c0_1, %c0_2] : memref<64x128xbf16, #tpu.memory_space<vmem>>, vector<64x128xbf16>
    %cst = arith.constant dense<0.000000e+00> : vector<128x128xf32>
    %3 = tpu.matmul %1, %2, %cst {dimension_numbers = #tpu.dot_dimension_numbers<[1], [0], [0], [1], [0, 0, 1, 1], [], []>} : vector<128x64xbf16>, vector<64x128xbf16>, vector<128x128xf32> -> vector<128x128xf32>
    %c0_3 = arith.constant 0 : index
    %c0_4 = arith.constant 0 : index
    %4 = vector.load %arg3[%c0_3, %c0_4] : memref<1x128xf32, #tpu.memory_space<vmem>>, vector<1x128xf32>
    %5 = vector.broadcast %4 : vector<1x128xf32> to vector<128x128xf32>
    %6 = arith.addf %3, %5 : vector<128x128xf32>
    %cst_5 = arith.constant 0.000000e+00 : f32
    %7 = vector.broadcast %cst_5 : f32 to vector<128x128xf32>
    %8 = arith.maximumf %6, %7 : vector<128x128xf32>
    %9 = arith.truncf %8 : vector<128x128xf32> to vector<128x128xbf16>
    %c0_6 = arith.constant 0 : index
    %c0_7 = arith.constant 0 : index
    %10 = vector.load %arg4[%c0_6, %c0_7] : memref<128x8xbf16, #tpu.memory_space<vmem>>, vector<128x8xbf16>
    %cst_8 = arith.constant dense<0.000000e+00> : vector<128x8xf32>
    %11 = tpu.matmul %9, %10, %cst_8 {dimension_numbers = #tpu.dot_dimension_numbers<[1], [0], [0], [1], [0, 0, 1, 1], [], []>} : vector<128x128xbf16>, vector<128x8xbf16>, vector<128x8xf32> -> vector<128x8xf32>
    %c0_9 = arith.constant 0 : index
    %c0_10 = arith.constant 0 : index
    %12 = vector.load %arg5[%c0_9, %c0_10] : memref<1x8xf32, #tpu.memory_space<vmem>>, vector<1x8xf32>
    %13 = vector.broadcast %12 : vector<1x8xf32> to vector<128x8xf32>
    %14 = arith.addf %11, %13 : vector<128x8xf32>
    %c0_11 = arith.constant 0 : index
    %c0_12 = arith.constant 0 : index
    %15 = vector.load %arg6[%c0_11, %c0_12] : memref<128x8xf32, #tpu.memory_space<vmem>>, vector<128x8xf32>
    tpu.vector_store %arg6[%c0_11, %c0_12], %14 {strides = array<i32>} : memref<128x8xf32, #tpu.memory_space<vmem>>, vector<128x8xf32>,
    return
  }
  func.func @transform_0(%arg0: i32) -> (i32, i32) {
    %c0_i32 = arith.constant 0 : i32
    %c0_i32_0 = arith.constant 0 : i32
    return %arg0, %c0_i32 : i32, i32
  }
  func.func @transform_1(%arg0: i32) -> (i32, i32) {
    %c0_i32 = arith.constant 0 : i32
    %c0_i32_0 = arith.constant 0 : i32
    %c0_i32_1 = arith.constant 0 : i32
    return %c0_i32, %c0_i32_0 : i32, i32
  }
  func.func @transform_2(%arg0: i32) -> (i32, i32) {
    %c0_i32 = arith.constant 0 : i32
    %c0_i32_0 = arith.constant 0 : i32
    %c0_i32_1 = arith.constant 0 : i32
    return %c0_i32, %c0_i32_0 : i32, i32
  }
  func.func @transform_3(%arg0: i32) -> (i32, i32) {
    %c0_i32 = arith.constant 0 : i32
    %c0_i32_0 = arith.constant 0 : i32
    %c0_i32_1 = arith.constant 0 : i32
    return %c0_i32, %c0_i32_0 : i32, i32
  }
  func.func @transform_4(%arg0: i32) -> (i32, i32) {
    %c0_i32 = arith.constant 0 : i32
    %c0_i32_0 = arith.constant 0 : i32
    %c0_i32_1 = arith.constant 0 : i32
    return %c0_i32, %c0_i32_0 : i32, i32
  }
  func.func @transform_5(%arg0: i32) -> (i32, i32) {
    %c0_i32 = arith.constant 0 : i32
    %c0_i32_0 = arith.constant 0 : i32
    return %arg0, %c0_i32 : i32, i32
  }
}

</mosaic_0001>

<llo_original>
// kernel: tpu_custom_call.1
$region0: #{tpu_custom_call.1}
  #allocation0 [shape = 'u32[]', space=smem, size = 0x4, offset = 0x4, fixed_abs, tag = 'smem constant byte address 0x4 - core index']
  #allocation1 [shape = 'u32[144,128]{1,0:T(1,128)}', space=vmem, size = 0x12000, scoped, tag = 'internal scratch']
  %s0 = inlined_call_operand.vmem [shape: f32[8,64], index: 0, kind: input, shape index: {}]
  %s1 = inlined_call_operand.vmem [shape: bf16[64,128], index: 1, kind: input, shape index: {}]
  %s2 = inlined_call_operand.vmem [shape: f32[1,128], index: 2, kind: input, shape index: {}]
  %s3 = inlined_call_operand.vmem [shape: bf16[128,8], index: 3, kind: input, shape index: {}]
  %s4 = inlined_call_operand.vmem [shape: f32[1,8], index: 4, kind: input, shape index: {}]
  %s5 = inlined_call_operand.hbm [shape: f32[8,8], index: 5, kind: output, shape index: {}]
  %s6 = sld [smem:[#allocation0]]
  $region30: #{tpu_custom_call.1} parent=0
    _
  %s8 = ssub.s32 1, %s6
  %s9 = scalar_select 0, %s8, %s6
  $region1: #{tpu_custom_call.1} parent=0
    #allocation2 [shape = 'u8[65536]{0}', space=vmem, size = 0x10000, scoped, tag = 'output window, operand 0, single buffered']
    #allocation3 [shape = 's32[1]{0}', space=sflag, size = 0x4, scoped, tag = 'scoped memory for tpu_custom_call.1']
    %10 = vsyncpa [#allocation3], 0
    // Predicated region
    $region2: #{tpu_custom_call.1} parent=1 // pred_check
      _
    $region3: #{tpu_custom_call.1} parent=1 // pred_check_branch
      %12 = sbr.rel (0) target = $region5
    $region4: #{tpu_custom_call.1} parent=1 // pred_region
      _
    $region5: #{tpu_custom_call.1} parent=1 // pred_fallthru
      _
    // Predicated region
    $region6: #{tpu_custom_call.1} parent=1 // pred_check
      _
    $region7: #{tpu_custom_call.1} parent=1 // pred_check_branch
      %14 = sbr.rel (0) target = $region9
    $region8: #{tpu_custom_call.1} parent=1 // pred_region
      _
    $region9: #{tpu_custom_call.1} parent=1 // pred_fallthru
      _
    // Predicated region
    $region10: #{tpu_custom_call.1} parent=1 // pred_check
      _
    $region11: #{tpu_custom_call.1} parent=1 // pred_check_branch
      %16 = sbr.rel (0) target = $region13
    $region12: #{tpu_custom_call.1} parent=1 // pred_region
      _
    $region13: #{tpu_custom_call.1} parent=1 // pred_fallthru
      _
    // Predicated region
    $region14: #{tpu_custom_call.1} parent=1 // pred_check
      _
    $region15: #{tpu_custom_call.1} parent=1 // pred_check_branch
      %18 = sbr.rel (0) target = $region17
    $region16: #{tpu_custom_call.1} parent=1 // pred_region
      _
    $region17: #{tpu_custom_call.1} parent=1 // pred_fallthru
      _
    // Predicated region
    $region18: #{tpu_custom_call.1} parent=1 // pred_check
      _
    $region19: #{tpu_custom_call.1} parent=1 // pred_check_branch
      %20 = sbr.rel (0) target = $region21
    $region20: #{tpu_custom_call.1} parent=1 // pred_region
      _
    $region21: #{tpu_custom_call.1} parent=1 // pred_fallthru
      _
    %v22 = vld [vmem:[%s0] sm:$0xff]
    %v23 = vld [vmem:[%s0 + $0x8] sm:$0xff]
    %v24 = vld [vmem:[%s0 + $0x10] sm:$0xff]
    %v25 = vld [vmem:[%s0 + $0x18] sm:$0xff]
    %v26 = vld [vmem:[%s0 + $0x20] sm:$0xff]
    %v27 = vld [vmem:[%s0 + $0x28] sm:$0xff]
    %v28 = vld [vmem:[%s0 + $0x30] sm:$0xff]
    %v29 = vld [vmem:[%s0 + $0x38] sm:$0xff]
    %v30 = vld [vmem:[%s0 + $0x40] sm:$0xff]
    %v31 = vld [vmem:[%s0 + $0x48] sm:$0xff]
    %v32 = vld [vmem:[%s0 + $0x50] sm:$0xff]
    %v33 = vld [vmem:[%s0 + $0x58] sm:$0xff]
    %v34 = vld [vmem:[%s0 + $0x60] sm:$0xff]
    %v35 = vld [vmem:[%s0 + $0x68] sm:$0xff]
    %v36 = vld [vmem:[%s0 + $0x70] sm:$0xff]
    %v37 = vld [vmem:[%s0 + $0x78] sm:$0xff]
    %v38 = vpack.c.bf16 %v23, %v22
    %v39 = vpack.c.bf16 %v25, %v24
    %v40 = vpack.c.bf16 %v27, %v26
    %v41 = vpack.c.bf16 %v29, %v28
    %v42 = vpack.c.bf16 %v31, %v30
    %v43 = vpack.c.bf16 %v33, %v32
    %v44 = vpack.c.bf16 %v35, %v34
    %v45 = vpack.c.bf16 %v37, %v36
    %v46 = vld [vmem:[%s1] sm:$0xf]
    %v47 = vld [vmem:[%s1 + $0x4] sm:$0xf]
    %v48 = vld [vmem:[%s1 + $0x8] sm:$0xf]
    %v49 = vld [vmem:[%s1 + $0xc] sm:$0xf]
    %v50 = vld [vmem:[%s1 + $0x10] sm:$0xf]
    %v51 = vld [vmem:[%s1 + $0x14] sm:$0xf]
    %v52 = vld [vmem:[%s1 + $0x18] sm:$0xf]
    %v53 = vld [vmem:[%s1 + $0x1c] sm:$0xf]
    %v54 = vld [vmem:[%s2] sm:$0x1]
    %v56 = vlaneseq
    %v57 = vshrl.u32 %v56, 7
    %v58 = vsub.s32 0, %v57
    %v59 = vrot.slane %v54, %v58
    %v69 = vunpack.c.l.b16 %v46
    %v70 = vunpack.c.l.b16 %v47
    %v71 = vunpack.c.l.b16 %v48
    %v72 = vunpack.c.l.b16 %v49
    %v73 = vunpack.c.l.b16 %v50
    %v74 = vunpack.c.l.b16 %v51
    %v75 = vunpack.c.l.b16 %v52
    %v76 = vunpack.c.l.b16 %v53
    %v77 = vpack.c.b16 %v70, %v69
    %v78 = vpack.c.b16 %v72, %v71
    %v79 = vpack.c.b16 %v74, %v73
    %v80 = vpack.c.b16 %v76, %v75
    %vm85 = vcmask 523264
    %v87 = vsel %vm85, %v38, 0
    %v90 = vsel %vm85, %v39, 0
    %v93 = vsel %vm85, %v40, 0
    %v96 = vsel %vm85, %v41, 0
    %v99 = vsel %vm85, %v42, 0
    %v102 = vsel %vm85, %v43, 0
    %v105 = vsel %vm85, %v44, 0
    %v108 = vsel %vm85, %v45, 0
    %110 = vmatprep.subr.bf16.mxu0 0
    %111 = vmatpush1.bf16.msra.mxu0 %v77
    %112 = vmatprep.subr.bf16.mxu0 0
    %113 = vmatpush1.bf16.msra.mxu0 %v78
    %114 = vmatprep.subr.bf16.mxu0 0
    %115 = vmatpush1.bf16.msra.mxu0 %v79
    %116 = vmatprep.subr.bf16.mxu0 0
    %117 = vmatpush1.bf16.msra.mxu0 %v80
    %118 = vmatprep.subr.bf16.mxu0 0
    %119 = vmatpush1.bf16.msra.mxu0 0
    %120 = vmatprep.subr.bf16.mxu0 0
    %121 = vmatpush1.bf16.msra.mxu0 0
    %122 = vmatprep.subr.bf16.mxu0 0
    %123 = vmatpush1.bf16.msra.mxu0 0
    %124 = vmatprep.subr.bf16.mxu0 0
    %125 = vmatpush1.bf16.msra.mxu0 0
    %126 = vmatprep.subr.bf16.mxu0 0
    %127 = vmatpush1.bf16.msra.mxu0 0
    %128 = vmatprep.subr.bf16.mxu0 0
    %129 = vmatpush1.bf16.msra.mxu0 0
    %130 = vmatprep.subr.bf16.mxu0 0
    %131 = vmatpush1.bf16.msra.mxu0 0
    %132 = vmatprep.subr.bf16.mxu0 0
    %133 = vmatpush1.bf16.msra.mxu0 0
    %134 = vmatprep.subr.bf16.mxu0 0
    %135 = vmatpush1.bf16.msra.mxu0 0
    %136 = vmatprep.subr.bf16.mxu0 0
    %137 = vmatpush1.bf16.msra.mxu0 0
    %138 = vmatprep.subr.bf16.mxu0 0
    %139 = vmatpush1.bf16.msra.mxu0 0
    %140 = vmatprep.subr.bf16.mxu0 0
    %141 = vmatpush1.bf16.msra.mxu0 0
    %142 = vmatprep.mubr.bf16.mxu0 0
    %143 = vmatmul.mubr.bf16.gmra.mrb[0].mxu0 %v87
    %v144 = vpop.f32.mrb[0].mxu0
    %v145 = vadd.f32 %v59, %v144
    %v146 = vpop.f32.mrb[0].mxu0
    %v147 = vpop.f32.mrb[0].mxu0
    %v148 = vadd.f32 %v59, %v147
    %v149 = vpop.f32.mrb[0].mxu0
    %150 = vmatprep.mubr.bf16.mxu0 0
    %151 = vmatmul.mubr.bf16.gmra.mrb[0].mxu0 %v90
    %v152 = vpop.f32.mrb[0].mxu0
    %v153 = vadd.f32 %v59, %v152
    %v154 = vpop.f32.mrb[0].mxu0
    %v155 = vpop.f32.mrb[0].mxu0
    %v156 = vadd.f32 %v59, %v155
    %v157 = vpop.f32.mrb[0].mxu0
    %158 = vmatprep.mubr.bf16.mxu0 0
    %159 = vmatmul.mubr.bf16.gmra.mrb[0].mxu0 %v93
    %v160 = vpop.f32.mrb[0].mxu0
    %v161 = vadd.f32 %v59, %v160
    %v162 = vpop.f32.mrb[0].mxu0
    %v163 = vpop.f32.mrb[0].mxu0
    %v164 = vadd.f32 %v59, %v163
    %v165 = vpop.f32.mrb[0].mxu0
    %166 = vmatprep.mubr.bf16.mxu0 0
    %167 = vmatmul.mubr.bf16.gmra.mrb[0].mxu0 %v96
    %v168 = vpop.f32.mrb[0].mxu0
    %v169 = vadd.f32 %v59, %v168
    %v170 = vpop.f32.mrb[0].mxu0
    %v171 = vpop.f32.mrb[0].mxu0
    %v172 = vadd.f32 %v59, %v171
    %v173 = vpop.f32.mrb[0].mxu0
    %174 = vmatprep.mubr.bf16.mxu0 0
    %175 = vmatmul.mubr.bf16.gmra.mrb[0].mxu0 %v99
    %v176 = vpop.f32.mrb[0].mxu0
    %v177 = vadd.f32 %v59, %v176
    %v178 = vpop.f32.mrb[0].mxu0
    %v179 = vpop.f32.mrb[0].mxu0
    %v180 = vadd.f32 %v59, %v179
    %v181 = vpop.f32.mrb[0].mxu0
    %182 = vmatprep.mubr.bf16.mxu0 0
    %183 = vmatmul.mubr.bf16.gmra.mrb[0].mxu0 %v102
    %v184 = vpop.f32.mrb[0].mxu0
    %v185 = vadd.f32 %v59, %v184
    %v186 = vpop.f32.mrb[0].mxu0
    %v187 = vpop.f32.mrb[0].mxu0
    %v188 = vadd.f32 %v59, %v187
    %v189 = vpop.f32.mrb[0].mxu0
    %190 = vmatprep.mubr.bf16.mxu0 0
    %191 = vmatmul.mubr.bf16.gmra.mrb[0].mxu0 %v105
    %v192 = vpop.f32.mrb[0].mxu0
    %v193 = vadd.f32 %v59, %v192
    %v194 = vpop.f32.mrb[0].mxu0
    %v195 = vpop.f32.mrb[0].mxu0
    %v196 = vadd.f32 %v59, %v195
    %v197 = vpop.f32.mrb[0].mxu0
    %198 = vmatprep.mubr.bf16.mxu0 0
    %199 = vmatmul.mubr.bf16.gmra.mrb[0].mxu0 %v108
    %v200 = vpop.f32.mrb[0].mxu0
    %v201 = vadd.f32 %v59, %v200
    %v202 = vpop.f32.mrb[0].mxu0
    %v203 = vpop.f32.mrb[0].mxu0
    %v204 = vadd.f32 %v59, %v203
    %v205 = vpop.f32.mrb[0].mxu0
    %206 = vdwg.mxu0
    %v207 = vmax.f32 %v145, 0.0
    %v208 = vmax.f32 %v148, 0.0
    %v209 = vmax.f32 %v153, 0.0
    %v210 = vmax.f32 %v156, 0.0
    %v211 = vmax.f32 %v161, 0.0
    %v212 = vmax.f32 %v164, 0.0
    %v213 = vmax.f32 %v169, 0.0
    %v214 = vmax.f32 %v172, 0.0
    %v215 = vmax.f32 %v177, 0.0
    %v216 = vmax.f32 %v180, 0.0
    %v217 = vmax.f32 %v185, 0.0
    %v218 = vmax.f32 %v188, 0.0
    %v219 = vmax.f32 %v193, 0.0
    %v220 = vmax.f32 %v196, 0.0
    %v221 = vmax.f32 %v201, 0.0
    %v222 = vmax.f32 %v204, 0.0
    %v223 = vpack.c.bf16 %v208, %v207
    %v224 = vpack.c.bf16 %v210, %v209
    %v225 = vpack.c.bf16 %v212, %v211
    %v226 = vpack.c.bf16 %v214, %v213
    %v227 = vpack.c.bf16 %v216, %v215
    %v228 = vpack.c.bf16 %v218, %v217
    %v229 = vpack.c.bf16 %v220, %v219
    %v230 = vpack.c.bf16 %v222, %v221
    %v231 = vld [vmem:[%s3] sm:$0xf]
    %v232 = vld [vmem:[%s3 + $0x4] sm:$0xf]
    %v233 = vld [vmem:[%s3 + $0x8] sm:$0xf]
    %v234 = vld [vmem:[%s3 + $0xc] sm:$0xf]
    %v235 = vld [vmem:[%s3 + $0x10] sm:$0xf]
    %v236 = vld [vmem:[%s3 + $0x14] sm:$0xf]
    %v237 = vld [vmem:[%s3 + $0x18] sm:$0xf]
    %v238 = vld [vmem:[%s3 + $0x1c] sm:$0xf]
    %v239 = vld [vmem:[%s3 + $0x20] sm:$0xf]
    %v240 = vld [vmem:[%s3 + $0x24] sm:$0xf]
    %v241 = vld [vmem:[%s3 + $0x28] sm:$0xf]
    %v242 = vld [vmem:[%s3 + $0x2c] sm:$0xf]
    %v243 = vld [vmem:[%s3 + $0x30] sm:$0xf]
    %v244 = vld [vmem:[%s3 + $0x34] sm:$0xf]
    %v245 = vld [vmem:[%s3 + $0x38] sm:$0xf]
    %v246 = vld [vmem:[%s3 + $0x3c] sm:$0xf]
    %v247 = vld [vmem:[%s4] sm:$0x1]
    %v249 = vlaneseq
    %v250 = vshrl.u32 %v249, 7
    %v251 = vsub.s32 0, %v250
    %v252 = vrot.slane %v247, %v251
    %v270 = vunpack.c.l.b16 %v231
    %v271 = vunpack.c.l.b16 %v232
    %v272 = vunpack.c.l.b16 %v233
    %v273 = vunpack.c.l.b16 %v234
    %v274 = vunpack.c.l.b16 %v235
    %v275 = vunpack.c.l.b16 %v236
    %v276 = vunpack.c.l.b16 %v237
    %v277 = vunpack.c.l.b16 %v238
    %v278 = vunpack.c.l.b16 %v239
    %v279 = vunpack.c.l.b16 %v240
    %v280 = vunpack.c.l.b16 %v241
    %v281 = vunpack.c.l.b16 %v242
    %v282 = vunpack.c.l.b16 %v243
    %v283 = vunpack.c.l.b16 %v244
    %v284 = vunpack.c.l.b16 %v245
    %v285 = vunpack.c.l.b16 %v246
    %v286 = vpack.c.b16 %v271, %v270
    %v287 = vpack.c.b16 %v273, %v272
    %v288 = vpack.c.b16 %v275, %v274
    %v289 = vpack.c.b16 %v277, %v276
    %v290 = vpack.c.b16 %v279, %v278
    %v291 = vpack.c.b16 %v281, %v280
    %v292 = vpack.c.b16 %v283, %v282
    %v293 = vpack.c.b16 %v285, %v284
    %302 = vmatprep.subr.bf16.mxu0 0
    %303 = vmatpush1.bf16.msra.mxu0 %v286
    %304 = vmatprep.subr.bf16.mxu0 0
    %305 = vmatpush1.bf16.msra.mxu0 %v287
    %306 = vmatprep.subr.bf16.mxu0 0
    %307 = vmatpush1.bf16.msra.mxu0 %v288
    %308 = vmatprep.subr.bf16.mxu0 0
    %309 = vmatpush1.bf16.msra.mxu0 %v289
    %310 = vmatprep.subr.bf16.mxu0 0
    %311 = vmatpush1.bf16.msra.mxu0 %v290
    %312 = vmatprep.subr.bf16.mxu0 0
    %313 = vmatpush1.bf16.msra.mxu0 %v291
    %314 = vmatprep.subr.bf16.mxu0 0
    %315 = vmatpush1.bf16.msra.mxu0 %v292
    %316 = vmatprep.subr.bf16.mxu0 0
    %317 = vmatpush1.bf16.msra.mxu0 %v293
    %318 = vmatprep.subr.bf16.mxu0 0
    %319 = vmatpush1.bf16.msra.mxu0 0
    %320 = vmatprep.subr.bf16.mxu0 0
    %321 = vmatpush1.bf16.msra.mxu0 0
    %322 = vmatprep.subr.bf16.mxu0 0
    %323 = vmatpush1.bf16.msra.mxu0 0
    %324 = vmatprep.subr.bf16.mxu0 0
    %325 = vmatpush1.bf16.msra.mxu0 0
    %326 = vmatprep.subr.bf16.mxu0 0
    %327 = vmatpush1.bf16.msra.mxu0 0
    %328 = vmatprep.subr.bf16.mxu0 0
    %329 = vmatpush1.bf16.msra.mxu0 0
    %330 = vmatprep.subr.bf16.mxu0 0
    %331 = vmatpush1.bf16.msra.mxu0 0
    %332 = vmatprep.subr.bf16.mxu0 0
    %333 = vmatpush1.bf16.msra.mxu0 0
    %334 = vmatprep.mubr.bf16.mxu0 0
    %335 = vmatmul.mubr.bf16.gmra.mrb[0].mxu0 %v223
    %v336 = vpop.f32.mrb[0].mxu0
    %v337 = vadd.f32 %v252, %v336
    %v338 = vpop.f32.mrb[0].mxu0
    %v339 = vpop.f32.mrb[0].mxu0
    %v340 = vadd.f32 %v252, %v339
    %v341 = vpop.f32.mrb[0].mxu0
    %342 = vmatprep.mubr.bf16.mxu0 0
    %343 = vmatmul.mubr.bf16.gmra.mrb[0].mxu0 %v224
    %v344 = vpop.f32.mrb[0].mxu0
    %v345 = vadd.f32 %v252, %v344
    %v346 = vpop.f32.mrb[0].mxu0
    %v347 = vpop.f32.mrb[0].mxu0
    %v348 = vadd.f32 %v252, %v347
    %v349 = vpop.f32.mrb[0].mxu0
    %350 = vmatprep.mubr.bf16.mxu0 0
    %351 = vmatmul.mubr.bf16.gmra.mrb[0].mxu0 %v225
    %v352 = vpop.f32.mrb[0].mxu0
    %v353 = vadd.f32 %v252, %v352
    %v354 = vpop.f32.mrb[0].mxu0
    %v355 = vpop.f32.mrb[0].mxu0
    %v356 = vadd.f32 %v252, %v355
    %v357 = vpop.f32.mrb[0].mxu0
    %358 = vmatprep.mubr.bf16.mxu0 0
    %359 = vmatmul.mubr.bf16.gmra.mrb[0].mxu0 %v226
    %v360 = vpop.f32.mrb[0].mxu0
    %v361 = vadd.f32 %v252, %v360
    %v362 = vpop.f32.mrb[0].mxu0
    %v363 = vpop.f32.mrb[0].mxu0
    %v364 = vadd.f32 %v252, %v363
    %v365 = vpop.f32.mrb[0].mxu0
    %366 = vmatprep.mubr.bf16.mxu0 0
    %367 = vmatmul.mubr.bf16.gmra.mrb[0].mxu0 %v227
    %v368 = vpop.f32.mrb[0].mxu0
    %v369 = vadd.f32 %v252, %v368
    %v370 = vpop.f32.mrb[0].mxu0
    %v371 = vpop.f32.mrb[0].mxu0
    %v372 = vadd.f32 %v252, %v371
    %v373 = vpop.f32.mrb[0].mxu0
    %374 = vmatprep.mubr.bf16.mxu0 0
    %375 = vmatmul.mubr.bf16.gmra.mrb[0].mxu0 %v228
    %v376 = vpop.f32.mrb[0].mxu0
    %v377 = vadd.f32 %v252, %v376
    %v378 = vpop.f32.mrb[0].mxu0
    %v379 = vpop.f32.mrb[0].mxu0
    %v380 = vadd.f32 %v252, %v379
    %v381 = vpop.f32.mrb[0].mxu0
    %382 = vmatprep.mubr.bf16.mxu0 0
    %383 = vmatmul.mubr.bf16.gmra.mrb[0].mxu0 %v229
    %v384 = vpop.f32.mrb[0].mxu0
    %v385 = vadd.f32 %v252, %v384
    %v386 = vpop.f32.mrb[0].mxu0
    %v387 = vpop.f32.mrb[0].mxu0
    %v388 = vadd.f32 %v252, %v387
    %v389 = vpop.f32.mrb[0].mxu0
    %390 = vmatprep.mubr.bf16.mxu0 0
    %391 = vmatmul.mubr.bf16.gmra.mrb[0].mxu0 %v230
    %v392 = vpop.f32.mrb[0].mxu0
    %v393 = vadd.f32 %v252, %v392
    %v394 = vpop.f32.mrb[0].mxu0
    %v395 = vpop.f32.mrb[0].mxu0
    %v396 = vadd.f32 %v252, %v395
    %v397 = vpop.f32.mrb[0].mxu0
    %398 = vdwg.mxu0
    %vm399 = vcmask 64512
    %400 = vst.msk [vmem:[#allocation2] sm:$0xff] %vm399, %v337
    %401 = vst.msk [vmem:[#allocation2 + $0x8] sm:$0xff] %vm399, %v340
    %402 = vst.msk [vmem:[#allocation2 + $0x10] sm:$0xff] %vm399, %v345
    %403 = vst.msk [vmem:[#allocation2 + $0x18] sm:$0xff] %vm399, %v348
    %404 = vst.msk [vmem:[#allocation2 + $0x20] sm:$0xff] %vm399, %v353
    %405 = vst.msk [vmem:[#allocation2 + $0x28] sm:$0xff] %vm399, %v356
    %406 = vst.msk [vmem:[#allocation2 + $0x30] sm:$0xff] %vm399, %v361
    %407 = vst.msk [vmem:[#allocation2 + $0x38] sm:$0xff] %vm399, %v364
    %408 = vst.msk [vmem:[#allocation2 + $0x40] sm:$0xff] %vm399, %v369
    %409 = vst.msk [vmem:[#allocation2 + $0x48] sm:$0xff] %vm399, %v372
    %410 = vst.msk [vmem:[#allocation2 + $0x50] sm:$0xff] %vm399, %v377
    %411 = vst.msk [vmem:[#allocation2 + $0x58] sm:$0xff] %vm399, %v380
    %412 = vst.msk [vmem:[#allocation2 + $0x60] sm:$0xff] %vm399, %v385
    %413 = vst.msk [vmem:[#allocation2 + $0x68] sm:$0xff] %vm399, %v388
    %414 = vst.msk [vmem:[#allocation2 + $0x70] sm:$0xff] %vm399, %v393
    %415 = vst.msk [vmem:[#allocation2 + $0x78] sm:$0xff] %vm399, %v396
    // Predicated region
    $region22: #{tpu_custom_call.1} parent=1 // pred_check
      _
    $region23: #{tpu_custom_call.1} parent=1 // pred_check_branch
      %417 = sbr.rel (0) target = $region25
    $region24: #{tpu_custom_call.1} parent=1 // pred_region
      %s419 = ssub.s32 2048, 128
      %420 = vsyncadd [#allocation3], %s419
      %s421 = sshll.u32 [#allocation2], 4
      %s422 = int_to_ptr.vmem [resolvable:$true] %s421
      %427 = dma.vmem_to_hbm [thread:$0]  %s422, 128, %s5, [#allocation3], 128, 128, 8
    $region25: #{tpu_custom_call.1} parent=1 // pred_fallthru
      _
    // Predicated region
    $region26: #{tpu_custom_call.1} parent=1 // pred_check
      _
    $region27: #{tpu_custom_call.1} parent=1 // pred_check_branch
      %429 = sbr.rel (0) target = $region29
    $region28: #{tpu_custom_call.1} parent=1 // pred_region
      %430 = dma.done [#allocation3], 2048
    $region29: #{tpu_custom_call.1} parent=1 // pred_fallthru
      _
    %431 = vsyncpa [#allocation3], 1

</llo_original>
